<compile_context>
chip_gen: v6e
topology: v6e:2x2x1
jax: 0.10.0
libtpu: 0.0.40
codegen_flags: <defaults>
</compile_context>

<pallas_src>
import functools

import jax
import jax.numpy as jnp
from jax.experimental import pallas as pl
from jax.experimental.pallas import tpu as pltpu


# ----------------------------------------------------------------------------
# Pallas kernel: body (2x Linear+Tanh) -> fused actor+critic head.
# Output is a packed (TM, P) slab (P = 128-lane padded 2*act_size+1):
#   cols [0, act)            -> means
#   cols [act, 2*act)        -> clamp(exp(.), 1e-4, 50)   (stds)
#   col  2*act               -> state value
#   cols [2*act+1, P)        -> zero padding (zero weights/bias)
# ----------------------------------------------------------------------------
def _actor_critic_kernel(x_ref, w1_ref, b1_ref, w2_ref, b2_ref,
                         wh_ref, bh_ref, out_ref, *, act_size):
    wdt = w1_ref.dtype
    # body: linear_1 + tanh_1   (bias add + tanh in f32)
    h = jnp.tanh(
        jnp.dot(x_ref[...].astype(wdt), w1_ref[...],
                preferred_element_type=jnp.float32) + b1_ref[...]
    )
    # body: linear_2 + tanh_2
    h = jnp.tanh(
        jnp.dot(h.astype(wdt), w2_ref[...],
                preferred_element_type=jnp.float32) + b2_ref[...]
    )
    # fused actor+critic head: one (TM, hidden) @ (hidden, P) matmul
    a = jnp.dot(h.astype(wdt), wh_ref[...],
                preferred_element_type=jnp.float32) + bh_ref[...]
    # lane-wise select: std columns get clamp(exp(.)), everything else identity.
    lane = jax.lax.broadcasted_iota(jnp.int32, a.shape, 1)
    is_std = jnp.logical_and(lane >= act_size, lane < 2 * act_size)
    out_ref[...] = jnp.where(is_std, jnp.clip(jnp.exp(a), 0.0001, 50.0), a)


# ----------------------------------------------------------------------------
# Wrapper
# ----------------------------------------------------------------------------
def actor_critic_forward(x, packed_params, act_size, *, tile_m=128):
    """x: (obs_size,) or (B, obs_size) float32.
    Returns (means, stds, state_values):
      unbatched -> (act_size,), (act_size,), (1,)
      batched   -> (B, act_size), (B, act_size), (B, 1)
    """
    w1, b1, w2, b2, wh, bh = packed_params
    squeeze = x.ndim == 1
    xb = x.reshape(1, -1) if squeeze else x
    xb = xb.astype(jnp.float32)
    B, obs = xb.shape
    P = wh.shape[1]  # lane-padded head width (multiple of 128)

    # pad batch to a multiple of the tile size
    Bp = ((B + tile_m - 1) // tile_m) * tile_m
    if Bp != B:
        xb = jnp.pad(xb, ((0, Bp - B), (0, 0)))
    grid = (Bp // tile_m,)

    kernel = functools.partial(_actor_critic_kernel, act_size=act_size)
    out = pl.pallas_call(
        kernel,
        out_shape=jax.ShapeDtypeStruct((Bp, P), jnp.float32),
        grid=grid,
        in_specs=[
            # batch-tiled observations
            pl.BlockSpec((tile_m, obs), lambda i: (i, 0)),
            # weights / biases: full arrays, constant index_map -> VMEM-resident
            pl.BlockSpec(w1.shape, lambda i: (0, 0)),
            pl.BlockSpec(b1.shape, lambda i: (0, 0)),
            pl.BlockSpec(w2.shape, lambda i: (0, 0)),
            pl.BlockSpec(b2.shape, lambda i: (0, 0)),
            pl.BlockSpec(wh.shape, lambda i: (0, 0)),
            pl.BlockSpec(bh.shape, lambda i: (0, 0)),
        ],
        out_specs=pl.BlockSpec((tile_m, P), lambda i: (i, 0)),
        compiler_params=pltpu.CompilerParams(
            dimension_semantics=("parallel",)),
    )(xb, w1, b1, w2, b2, wh, bh)

    out = out[:B]
    means = out[:, :act_size]
    stds = out[:, act_size:2 * act_size]
    values = out[:, 2 * act_size:2 * act_size + 1]
    if squeeze:
        return means[0], stds[0], values[0]
    return means, stds, values


# ----------------------------------------------------------------------------
# Parameter init (mirrors nn.Linear's U(-1/sqrt(fan_in), +1/sqrt(fan_in)))
# Weights are created directly in (in_features, out_features) layout.
# ----------------------------------------------------------------------------
def init_params(key, obs_size, act_size, hidden_size):
    def linear(key, fan_in, fan_out):
        kw, kb = jax.random.split(key)
        bound = 1.0 / jnp.sqrt(fan_in)
        w = jax.random.uniform(kw, (fan_in, fan_out), jnp.float32, -bound, bound)
        b = jax.random.uniform(kb, (1, fan_out), jnp.float32, -bound, bound)
        return w, b

    k1, k2, k3, k4 = jax.random.split(key, 4)
    w1, b1 = linear(k1, obs_size, hidden_size)        # body.linear_1
    w2, b2 = linear(k2, hidden_size, hidden_size)     # body.linear_2
    wa, ba = linear(k3, hidden_size, act_size * 2)    # actor
    wc, bc = linear(k4, hidden_size, 1)               # critic
    return (w1, b1, w2, b2, wa, ba, wc, bc)


def pack_params(raw_params, act_size, *, use_bf16=False):
    """Fuse actor+critic head, pad it to a 128-lane multiple, optionally cast
    weights to bf16 (v6e/v7x MXU path). Biases stay f32."""
    w1, b1, w2, b2, wa, ba, wc, bc = raw_params
    head_w = jnp.concatenate([wa, wc], axis=1)   # (hidden, 2*act_size + 1)
    head_b = jnp.concatenate([ba, bc], axis=1)   # (1, 2*act_size + 1)
    n_out = head_w.shape[1]
    P = max(128, ((n_out + 127) // 128) * 128)
    head_w = jnp.pad(head_w, ((0, 0), (0, P - n_out)))
    head_b = jnp.pad(head_b, ((0, 0), (0, P - n_out)))
    wdt = jnp.bfloat16 if use_bf16 else jnp.float32
    return (w1.astype(wdt), b1.astype(jnp.float32),
            w2.astype(wdt), b2.astype(jnp.float32),
            head_w.astype(wdt), head_b.astype(jnp.float32))


# Pure-JAX reference for correctness checking (unbatched, raw params).
def reference_forward(x, raw_params, act_size):
    w1, b1, w2, b2, wa, ba, wc, bc = raw_params
    h = jnp.tanh(x[None, :] @ w1 + b1)
    h = jnp.tanh(h @ w2 + b2)
    a = (h @ wa + ba)[0]
    means = a[:act_size]
    stds = jnp.clip(jnp.exp(a[act_size:]), 0.0001, 50.0)
    value = (h @ wc + bc)[0]
    return means, stds, value


if __name__ == "__main__":
    obs_size, act_size, hidden_size = 32, 8, 64

    key = jax.random.PRNGKey(0)
    k_x1, k_xb, k_p = jax.random.split(key, 3)
    raw_params = init_params(k_p, obs_size, act_size, hidden_size)

    # ---- batched path (B not a multiple of the 128-row tile, exercises padding)
    B = 200
    xb = jax.random.normal(k_xb, (B, obs_size), dtype=jnp.float32)
    packed_f32 = pack_params(raw_params, act_size, use_bf16=False)
    means_b, stds_b, vals_b = actor_critic_forward(xb, packed_f32, act_size)
    jax.block_until_ready((means_b, stds_b, vals_b))

    r_means, r_stds, r_vals = jax.vmap(
        lambda xi: reference_forward(xi, raw_params, act_size))(xb)
    assert means_b.shape == (B, act_size)
    assert stds_b.shape == (B, act_size)
    assert vals_b.shape == (B, 1)
    assert jnp.allclose(means_b, r_means, atol=1e-4)
    assert jnp.allclose(stds_b, r_stds, atol=1e-4)
    assert jnp.allclose(vals_b, r_vals, atol=1e-4)

    # ---- unbatched path (original torch.split-along-dim-0 semantics)
    x1 = jax.random.normal(k_x1, (obs_size,), dtype=jnp.float32)
    m1, s1, v1 = actor_critic_forward(x1, packed_f32, act_size)
    jax.block_until_ready((m1, s1, v1))
    rm1, rs1, rv1 = reference_forward(x1, raw_params, act_size)
    assert m1.shape == (act_size,) and s1.shape == (act_size,) and v1.shape == (1,)
    assert jnp.allclose(m1, rm1, atol=1e-4)
    assert jnp.allclose(s1, rs1, atol=1e-4)
    assert jnp.allclose(v1, rv1, atol=1e-4)

    # ---- bf16-weight path (v6e/v7x MXU; f32 accumulation), loose tolerance
    packed_bf16 = pack_params(raw_params, act_size, use_bf16=True)
    mb, sb, vb = actor_critic_forward(xb, packed_bf16, act_size)
    jax.block_until_ready((mb, sb, vb))
    assert jnp.allclose(mb, r_means, atol=0.1, rtol=0.1)
    assert jnp.allclose(sb, r_stds, atol=0.1, rtol=0.1)
    assert jnp.allclose(vb, r_vals, atol=0.1, rtol=0.1)

    print("KERNEL_OK")
</pallas_src>

<mosaic_0001>
module attributes {stable_mosaic.version = 11 : i64} {
  func.func @_actor_critic_kernel(%arg0: i32, %arg1: memref<128x32xf32, #tpu.memory_space<vmem>>, %arg2: memref<32x64xf32, #tpu.memory_space<vmem>>, %arg3: memref<1x64xf32, #tpu.memory_space<vmem>>, %arg4: memref<64x64xf32, #tpu.memory_space<vmem>>, %arg5: memref<1x64xf32, #tpu.memory_space<vmem>>, %arg6: memref<64x128xf32, #tpu.memory_space<vmem>>, %arg7: memref<1x128xf32, #tpu.memory_space<vmem>>, %arg8: memref<128x128xf32, #tpu.memory_space<vmem>>) attributes {dimension_semantics = [#tpu.dimension_semantics<parallel>], iteration_bounds = array<i64: 2>, scalar_prefetch = 0 : i64, scratch_operands = 0 : i64, tpu.core_type = #tpu.core_type<tc>, window_params = [{transform_indices = @transform_0, window_bounds = array<i64: 128, 32>}, {pipeline_mode = #tpu.pipeline_mode<synchronous>, transform_indices = @transform_1, window_bounds = array<i64: 32, 64>}, {pipeline_mode = #tpu.pipeline_mode<synchronous>, transform_indices = @transform_2, window_bounds = array<i64: 1, 64>}, {pipeline_mode = #tpu.pipeline_mode<synchronous>, transform_indices = @transform_3, window_bounds = array<i64: 64, 64>}, {pipeline_mode = #tpu.pipeline_mode<synchronous>, transform_indices = @transform_4, window_bounds = array<i64: 1, 64>}, {pipeline_mode = #tpu.pipeline_mode<synchronous>, transform_indices = @transform_5, window_bounds = array<i64: 64, 128>}, {pipeline_mode = #tpu.pipeline_mode<synchronous>, transform_indices = @transform_6, window_bounds = array<i64: 1, 128>}, {transform_indices = @transform_7, window_bounds = array<i64: 128, 128>}]} {
    %c0 = arith.constant 0 : index
    %c0_0 = arith.constant 0 : index
    %0 = vector.load %arg1[%c0, %c0_0] : memref<128x32xf32, #tpu.memory_space<vmem>>, vector<128x32xf32>
    %c0_1 = arith.constant 0 : index
    %c0_2 = arith.constant 0 : index
    %1 = vector.load %arg2[%c0_1, %c0_2] : memref<32x64xf32, #tpu.memory_space<vmem>>, vector<32x64xf32>
    %cst = arith.constant dense<0.000000e+00> : vector<128x64xf32>
    %2 = tpu.matmul %0, %1, %cst {dimension_numbers = #tpu.dot_dimension_numbers<[1], [0], [0], [1], [0, 0, 1, 1], [], []>} : vector<128x32xf32>, vector<32x64xf32>, vector<128x64xf32> -> vector<128x64xf32>
    %c0_3 = arith.constant 0 : index
    %c0_4 = arith.constant 0 : index
    %3 = vector.load %arg3[%c0_3, %c0_4] : memref<1x64xf32, #tpu.memory_space<vmem>>, vector<1x64xf32>
    %4 = vector.broadcast %3 : vector<1x64xf32> to vector<128x64xf32>
    %5 = arith.addf %2, %4 : vector<128x64xf32>
    %6 = math.tanh %5 : vector<128x64xf32>
    %c0_5 = arith.constant 0 : index
    %c0_6 = arith.constant 0 : index
    %7 = vector.load %arg4[%c0_5, %c0_6] : memref<64x64xf32, #tpu.memory_space<vmem>>, vector<64x64xf32>
    %cst_7 = arith.constant dense<0.000000e+00> : vector<128x64xf32>
    %8 = tpu.matmul %6, %7, %cst_7 {dimension_numbers = #tpu.dot_dimension_numbers<[1], [0], [0], [1], [0, 0, 1, 1], [], []>} : vector<128x64xf32>, vector<64x64xf32>, vector<128x64xf32> -> vector<128x64xf32>
    %c0_8 = arith.constant 0 : index
    %c0_9 = arith.constant 0 : index
    %9 = vector.load %arg5[%c0_8, %c0_9] : memref<1x64xf32, #tpu.memory_space<vmem>>, vector<1x64xf32>
    %10 = vector.broadcast %9 : vector<1x64xf32> to vector<128x64xf32>
    %11 = arith.addf %8, %10 : vector<128x64xf32>
    %12 = math.tanh %11 : vector<128x64xf32>
    %c0_10 = arith.constant 0 : index
    %c0_11 = arith.constant 0 : index
    %13 = vector.load %arg6[%c0_10, %c0_11] : memref<64x128xf32, #tpu.memory_space<vmem>>, vector<64x128xf32>
    %cst_12 = arith.constant dense<0.000000e+00> : vector<128x128xf32>
    %14 = tpu.matmul %12, %13, %cst_12 {dimension_numbers = #tpu.dot_dimension_numbers<[1], [0], [0], [1], [0, 0, 1, 1], [], []>} : vector<128x64xf32>, vector<64x128xf32>, vector<128x128xf32> -> vector<128x128xf32>
    %c0_13 = arith.constant 0 : index
    %c0_14 = arith.constant 0 : index
    %15 = vector.load %arg7[%c0_13, %c0_14] : memref<1x128xf32, #tpu.memory_space<vmem>>, vector<1x128xf32>
    %16 = vector.broadcast %15 : vector<1x128xf32> to vector<128x128xf32>
    %17 = arith.addf %14, %16 : vector<128x128xf32>
    %18 = tpu.iota {dimensions = array<i32: 1>} : vector<128x128xi32>
    %c8_i32 = arith.constant 8 : i32
    %19 = vector.broadcast %c8_i32 : i32 to vector<128x128xi32>
    %20 = arith.cmpi sge, %18, %19 : vector<128x128xi32>
    %c16_i32 = arith.constant 16 : i32
    %21 = vector.broadcast %c16_i32 : i32 to vector<128x128xi32>
    %22 = arith.cmpi slt, %18, %21 : vector<128x128xi32>
    %23 = arith.andi %20, %22 : vector<128x128xi1>
    %24 = math.exp %17 : vector<128x128xf32>
    %cst_15 = arith.constant 9.99999974E-5 : f32
    %cst_16 = arith.constant 5.000000e+01 : f32
    %25 = vector.broadcast %cst_15 : f32 to vector<128x128xf32>
    %26 = arith.maximumf %25, %24 : vector<128x128xf32>
    %27 = vector.broadcast %cst_16 : f32 to vector<128x128xf32>
    %28 = arith.minimumf %27, %26 : vector<128x128xf32>
    %29 = arith.select %23, %28, %17 : vector<128x128xi1>, vector<128x128xf32>
    %c0_17 = arith.constant 0 : index
    %c0_18 = arith.constant 0 : index
    %30 = vector.load %arg8[%c0_17, %c0_18] : memref<128x128xf32, #tpu.memory_space<vmem>>, vector<128x128xf32>
    tpu.vector_store %arg8[%c0_17, %c0_18], %29 {strides = array<i32>} : memref<128x128xf32, #tpu.memory_space<vmem>>, vector<128x128xf32>,
    return
  }
  func.func @transform_0(%arg0: i32) -> (i32, i32) {
    %c0_i32 = arith.constant 0 : i32
    %c0_i32_0 = arith.constant 0 : i32
    return %arg0, %c0_i32 : i32, i32
  }
  func.func @transform_1(%arg0: i32) -> (i32, i32) {
    %c0_i32 = arith.constant 0 : i32
    %c0_i32_0 = arith.constant 0 : i32
    %c0_i32_1 = arith.constant 0 : i32
    return %c0_i32, %c0_i32_0 : i32, i32
  }
  func.func @transform_2(%arg0: i32) -> (i32, i32) {
    %c0_i32 = arith.constant 0 : i32
    %c0_i32_0 = arith.constant 0 : i32
    %c0_i32_1 = arith.constant 0 : i32
    return %c0_i32, %c0_i32_0 : i32, i32
  }
  func.func @transform_3(%arg0: i32) -> (i32, i32) {
    %c0_i32 = arith.constant 0 : i32
    %c0_i32_0 = arith.constant 0 : i32
    %c0_i32_1 = arith.constant 0 : i32
    return %c0_i32, %c0_i32_0 : i32, i32
  }
  func.func @transform_4(%arg0: i32) -> (i32, i32) {
    %c0_i32 = arith.constant 0 : i32
    %c0_i32_0 = arith.constant 0 : i32
    %c0_i32_1 = arith.constant 0 : i32
    return %c0_i32, %c0_i32_0 : i32, i32
  }
  func.func @transform_5(%arg0: i32) -> (i32, i32) {
    %c0_i32 = arith.constant 0 : i32
    %c0_i32_0 = arith.constant 0 : i32
    %c0_i32_1 = arith.constant 0 : i32
    return %c0_i32, %c0_i32_0 : i32, i32
  }
  func.func @transform_6(%arg0: i32) -> (i32, i32) {
    %c0_i32 = arith.constant 0 : i32
    %c0_i32_0 = arith.constant 0 : i32
    %c0_i32_1 = arith.constant 0 : i32
    return %c0_i32, %c0_i32_0 : i32, i32
  }
  func.func @transform_7(%arg0: i32) -> (i32, i32) {
    %c0_i32 = arith.constant 0 : i32
    %c0_i32_0 = arith.constant 0 : i32
    return %arg0, %c0_i32 : i32, i32
  }
}

</mosaic_0001>

<llo_original>
// kernel: tpu_custom_call.1
$region0: #{tpu_custom_call.1}
  #allocation0 [shape = 'u32[]', space=smem, size = 0x4, offset = 0x4, fixed_abs, tag = 'smem constant byte address 0x4 - core index']
  #allocation1 [shape = 'u32[144,128]{1,0:T(1,128)}', space=vmem, size = 0x12000, scoped, tag = 'internal scratch']
  %s0 = inlined_call_operand.vmem [shape: f32[256,32], index: 0, kind: input, shape index: {}]
  %s1 = inlined_call_operand.vmem [shape: f32[32,64], index: 1, kind: input, shape index: {}]
  %s2 = inlined_call_operand.vmem [shape: f32[1,64], index: 2, kind: input, shape index: {}]
  %s3 = inlined_call_operand.vmem [shape: f32[64,64], index: 3, kind: input, shape index: {}]
  %s4 = inlined_call_operand.vmem [shape: f32[1,64], index: 4, kind: input, shape index: {}]
  %s5 = inlined_call_operand.vmem [shape: f32[64,128], index: 5, kind: input, shape index: {}]
  %s6 = inlined_call_operand.vmem [shape: f32[1,128], index: 6, kind: input, shape index: {}]
  %s7 = inlined_call_operand.hbm [shape: f32[256,128], index: 7, kind: output, shape index: {}]
  %s8 = sld [smem:[#allocation0]]
  $region61: #{tpu_custom_call.1} parent=0
    _
  %s10 = ssub.s32 1, %s8
  %s11 = scalar_select 0, %s10, %s8
  $region1: #{tpu_custom_call.1} parent=0
    #allocation2 [shape = 'u8[131072]{0}', space=vmem, size = 0x20000, scoped, tag = 'output window, operand 0']
    #allocation3 [shape = 's32[2]{0}', space=sflag, size = 0x8, scoped, tag = 'scoped memory for tpu_custom_call.1']
    %12 = vsyncpa [#allocation3], 0
    %s13 = scalar_lea.sflag [#allocation3], 1
    %14 = vsyncpa %s13, 0
    loop: start=0, step=1, limit=4
    $region2: #{tpu_custom_call.1} parent=1 // loop_pre_header
      _
    $region3: #{tpu_custom_call.1} parent=1 // loop_header
      %s16 = sphi 0, %s20
      %p17 = scmp.ge.s32.totalorder %s16, 4
      %s26 = sphi 0, %s28
      %s29 = sphi 0, %s26
      %s30 = sphi 0, %s29
      %s46 = sphi 0, %s30
      %s50 = sphi 0, %s50
      %s52 = sphi 0, %s50
      %s53 = sphi 0, %s52
      %s67 = sphi 0, %s53
      %s71 = sphi 0, %s71
      %s73 = sphi 0, %s71
      %s74 = sphi 0, %s73
      %s88 = sphi 0, %s74
      %s92 = sphi 0, %s92
      %s94 = sphi 0, %s92
      %s95 = sphi 0, %s94
      %s109 = sphi 0, %s95
      %s113 = sphi 0, %s113
      %s115 = sphi 0, %s113
      %s116 = sphi 0, %s115
      %s130 = sphi 0, %s116
      %s134 = sphi 0, %s134
      %s136 = sphi 0, %s134
      %s137 = sphi 0, %s136
      %s151 = sphi 0, %s137
      %s155 = sphi 0, %s155
      %s157 = sphi 0, %s155
      %s158 = sphi 0, %s157
      %s172 = sphi 0, %s158
      %s178 = sphi 0, %s180
      %s181 = sphi 0, %s178
      %s182 = sphi 0, %s181
      %s198 = sphi 0, %s182
    $region4: #{tpu_custom_call.1} parent=1 // loop_header_branch
      %19 = sbr.rel (%p17) target = $region8
    $region5: #{tpu_custom_call.1} parent=1 // loop_body
      %s21 = ssub.s32 %s16, 1
      %s22 = ssub.s32 %s16, 2
      %s23 = sadd.s32 %s16, 1
      %s24 = ssub.s32 %s16, %s23
      %p25 = scmp.eq.s32.totalorder %s24, 0
      %s27 = sadd.s32 %s26, 1
      %s28 = scalar_select %p25, %s26, %s27
      %p31 = pneg %p25
      %p32 = scmp.eq.s32.totalorder %s16, 1
      %p33 = por %p31, %p32
      %p34 = scmp.ne.s32.totalorder %s26, %s29
      %p35 = scmp.eq.s32.totalorder %s16, 0
      %p36 = por %p34, %p35
      %p37 = scmp.ne.s32.totalorder %s26, %s29
      %p38 = scmp.eq.s32.totalorder %s21, 1
      %p39 = por %p37, %p38
      %p40 = scmp.ne.s32.totalorder %s29, %s30
      %p41 = scmp.eq.s32.totalorder %s21, 0
      %p42 = por %p40, %p41
      %p43 = scmp.ne.s32.totalorder %s29, %s30
      %p44 = scmp.eq.s32.totalorder %s22, 1
      %p45 = por %p43, %p44
      %p47 = scmp.ne.s32.totalorder %s30, %s46
      %p48 = scmp.eq.s32.totalorder %s22, 0
      %p49 = por %p47, %p48
      %s51 = sadd.s32 %s50, 1
      %p54 = scmp.eq.s32.totalorder %s16, 1
      %p55 = scmp.ne.s32.totalorder %s50, %s52
      %p56 = scmp.eq.s32.totalorder %s16, 0
      %p57 = por %p55, %p56
      %p58 = scmp.ne.s32.totalorder %s50, %s52
      %p59 = scmp.eq.s32.totalorder %s21, 1
      %p60 = por %p58, %p59
      %p61 = scmp.ne.s32.totalorder %s52, %s53
      %p62 = scmp.eq.s32.totalorder %s21, 0
      %p63 = por %p61, %p62
      %p64 = scmp.ne.s32.totalorder %s52, %s53
      %p65 = scmp.eq.s32.totalorder %s22, 1
      %p66 = por %p64, %p65
      %p68 = scmp.ne.s32.totalorder %s53, %s67
      %p69 = scmp.eq.s32.totalorder %s22, 0
      %p70 = por %p68, %p69
      %s72 = sadd.s32 %s71, 1
      %p75 = scmp.eq.s32.totalorder %s16, 1
      %p76 = scmp.ne.s32.totalorder %s71, %s73
      %p77 = scmp.eq.s32.totalorder %s16, 0
      %p78 = por %p76, %p77
      %p79 = scmp.ne.s32.totalorder %s71, %s73
      %p80 = scmp.eq.s32.totalorder %s21, 1
      %p81 = por %p79, %p80
      %p82 = scmp.ne.s32.totalorder %s73, %s74
      %p83 = scmp.eq.s32.totalorder %s21, 0
      %p84 = por %p82, %p83
      %p85 = scmp.ne.s32.totalorder %s73, %s74
      %p86 = scmp.eq.s32.totalorder %s22, 1
      %p87 = por %p85, %p86
      %p89 = scmp.ne.s32.totalorder %s74, %s88
      %p90 = scmp.eq.s32.totalorder %s22, 0
      %p91 = por %p89, %p90
      %s93 = sadd.s32 %s92, 1
      %p96 = scmp.eq.s32.totalorder %s16, 1
      %p97 = scmp.ne.s32.totalorder %s92, %s94
      %p98 = scmp.eq.s32.totalorder %s16, 0
      %p99 = por %p97, %p98
      %p100 = scmp.ne.s32.totalorder %s92, %s94
      %p101 = scmp.eq.s32.totalorder %s21, 1
      %p102 = por %p100, %p101
      %p103 = scmp.ne.s32.totalorder %s94, %s95
      %p104 = scmp.eq.s32.totalorder %s21, 0
      %p105 = por %p103, %p104
      %p106 = scmp.ne.s32.totalorder %s94, %s95
      %p107 = scmp.eq.s32.totalorder %s22, 1
      %p108 = por %p106, %p107
      %p110 = scmp.ne.s32.totalorder %s95, %s109
      %p111 = scmp.eq.s32.totalorder %s22, 0
      %p112 = por %p110, %p111
      %s114 = sadd.s32 %s113, 1
      %p117 = scmp.eq.s32.totalorder %s16, 1
      %p118 = scmp.ne.s32.totalorder %s113, %s115
      %p119 = scmp.eq.s32.totalorder %s16, 0
      %p120 = por %p118, %p119
      %p121 = scmp.ne.s32.totalorder %s113, %s115
      %p122 = scmp.eq.s32.totalorder %s21, 1
      %p123 = por %p121, %p122
      %p124 = scmp.ne.s32.totalorder %s115, %s116
      %p125 = scmp.eq.s32.totalorder %s21, 0
      %p126 = por %p124, %p125
      %p127 = scmp.ne.s32.totalorder %s115, %s116
      %p128 = scmp.eq.s32.totalorder %s22, 1
      %p129 = por %p127, %p128
      %p131 = scmp.ne.s32.totalorder %s116, %s130
      %p132 = scmp.eq.s32.totalorder %s22, 0
      %p133 = por %p131, %p132
      %s135 = sadd.s32 %s134, 1
      %p138 = scmp.eq.s32.totalorder %s16, 1
      %p139 = scmp.ne.s32.totalorder %s134, %s136
      %p140 = scmp.eq.s32.totalorder %s16, 0
      %p141 = por %p139, %p140
      %p142 = scmp.ne.s32.totalorder %s134, %s136
      %p143 = scmp.eq.s32.totalorder %s21, 1
      %p144 = por %p142, %p143
      %p145 = scmp.ne.s32.totalorder %s136, %s137
      %p146 = scmp.eq.s32.totalorder %s21, 0
      %p147 = por %p145, %p146
      %p148 = scmp.ne.s32.totalorder %s136, %s137
      %p149 = scmp.eq.s32.totalorder %s22, 1
      %p150 = por %p148, %p149
      %p152 = scmp.ne.s32.totalorder %s137, %s151
      %p153 = scmp.eq.s32.totalorder %s22, 0
      %p154 = por %p152, %p153
      %s156 = sadd.s32 %s155, 1
      %p159 = scmp.eq.s32.totalorder %s16, 1
      %p160 = scmp.ne.s32.totalorder %s155, %s157
      %p161 = scmp.eq.s32.totalorder %s16, 0
      %p162 = por %p160, %p161
      %p163 = scmp.ne.s32.totalorder %s155, %s157
      %p164 = scmp.eq.s32.totalorder %s21, 1
      %p165 = por %p163, %p164
      %p166 = scmp.ne.s32.totalorder %s157, %s158
      %p167 = scmp.eq.s32.totalorder %s21, 0
      %p168 = por %p166, %p167
      %p169 = scmp.ne.s32.totalorder %s157, %s158
      %p170 = scmp.eq.s32.totalorder %s22, 1
      %p171 = por %p169, %p170
      %p173 = scmp.ne.s32.totalorder %s158, %s172
      %p174 = scmp.eq.s32.totalorder %s22, 0
      %p175 = por %p173, %p174
      %s176 = ssub.s32 %s16, %s23
      %p177 = scmp.eq.s32.totalorder %s176, 0
      %s179 = sadd.s32 %s178, 1
      %s180 = scalar_select %p177, %s178, %s179
      %p183 = pneg %p177
      %p184 = scmp.eq.s32.totalorder %s16, 1
      %p185 = por %p183, %p184
      %p186 = scmp.ne.s32.totalorder %s178, %s181
      %p187 = scmp.eq.s32.totalorder %s16, 0
      %p188 = por %p186, %p187
      %p189 = scmp.ne.s32.totalorder %s178, %s181
      %p190 = scmp.eq.s32.totalorder %s21, 1
      %p191 = por %p189, %p190
      %p192 = scmp.ne.s32.totalorder %s181, %s182
      %p193 = scmp.eq.s32.totalorder %s21, 0
      %p194 = por %p192, %p193
      %p195 = scmp.ne.s32.totalorder %s181, %s182
      %p196 = scmp.eq.s32.totalorder %s22, 1
      %p197 = por %p195, %p196
      %p199 = scmp.ne.s32.totalorder %s182, %s198
      %p200 = scmp.eq.s32.totalorder %s22, 0
      %p201 = por %p199, %p200
      %p202 = scmp.le.s32.totalorder 1, %s16
      %p203 = scmp.lt.s32.totalorder %s16, 3
      %p204 = pnand %p202, %p203
      %p205 = pneg %p204
      // Predicated region
      $region9: #{tpu_custom_call.1} parent=5 // pred_check
        _
      $region10: #{tpu_custom_call.1} parent=5 // pred_check_branch
        %207 = sbr.rel (%p204) target = $region12
      $region11: #{tpu_custom_call.1} parent=5 // pred_region
        %s208 = ssub.s32 %s16, 1
        // Predicated region
        $region13: #{tpu_custom_call.1} parent=11 // pred_check
          %p209 = pneg %p63
        $region14: #{tpu_custom_call.1} parent=11 // pred_check_branch
          %211 = sbr.rel (%p209) target = $region16
        $region15: #{tpu_custom_call.1} parent=11 // pred_region
          _
        $region16: #{tpu_custom_call.1} parent=11 // pred_fallthru
          _
        // Predicated region
        $region17: #{tpu_custom_call.1} parent=11 // pred_check
          %p212 = pneg %p84
        $region18: #{tpu_custom_call.1} parent=11 // pred_check_branch
          %214 = sbr.rel (%p212) target = $region20
        $region19: #{tpu_custom_call.1} parent=11 // pred_region
          _
        $region20: #{tpu_custom_call.1} parent=11 // pred_fallthru
          _
        // Predicated region
        $region21: #{tpu_custom_call.1} parent=11 // pred_check
          %p215 = pneg %p105
        $region22: #{tpu_custom_call.1} parent=11 // pred_check_branch
          %217 = sbr.rel (%p215) target = $region24
        $region23: #{tpu_custom_call.1} parent=11 // pred_region
          _
        $region24: #{tpu_custom_call.1} parent=11 // pred_fallthru
          _
        // Predicated region
        $region25: #{tpu_custom_call.1} parent=11 // pred_check
          %p218 = pneg %p126
        $region26: #{tpu_custom_call.1} parent=11 // pred_check_branch
          %220 = sbr.rel (%p218) target = $region28
        $region27: #{tpu_custom_call.1} parent=11 // pred_region
          _
        $region28: #{tpu_custom_call.1} parent=11 // pred_fallthru
          _
        // Predicated region
        $region29: #{tpu_custom_call.1} parent=11 // pred_check
          %p221 = pneg %p147
        $region30: #{tpu_custom_call.1} parent=11 // pred_check_branch
          %223 = sbr.rel (%p221) target = $region32
        $region31: #{tpu_custom_call.1} parent=11 // pred_region
          _
        $region32: #{tpu_custom_call.1} parent=11 // pred_fallthru
          _
        // Predicated region
        $region33: #{tpu_custom_call.1} parent=11 // pred_check
          %p224 = pneg %p168
        $region34: #{tpu_custom_call.1} parent=11 // pred_check_branch
          %226 = sbr.rel (%p224) target = $region36
        $region35: #{tpu_custom_call.1} parent=11 // pred_region
          _
        $region36: #{tpu_custom_call.1} parent=11 // pred_fallthru
          _
      $region12: #{tpu_custom_call.1} parent=5 // pred_fallthru
        _
      %p227 = scmp.lt.s32.totalorder %s16, 2
      // Predicated region
      $region37: #{tpu_custom_call.1} parent=5 // pred_check
        %p228 = pneg %p227
      $region38: #{tpu_custom_call.1} parent=5 // pred_check_branch
        %230 = sbr.rel (%p228) target = $region40
      $region39: #{tpu_custom_call.1} parent=5 // pred_region
        // Predicated region
        $region41: #{tpu_custom_call.1} parent=39 // pred_check
          %p231 = pneg %p36
        $region42: #{tpu_custom_call.1} parent=39 // pred_check_branch
          %233 = sbr.rel (%p231) target = $region44
        $region43: #{tpu_custom_call.1} parent=39 // pred_region
          %s234 = smul.u32 16, %s16
          %p235 = scmp.lt.s32.totalorder %s234, 31
          %s236 = scalar_select %p235, %s234, 31
          %s237 = smul.addr %s236, 8
          %s238 = scalar_lea.vmem %s0, %s237
          %s239 = smul.u32 16, %s16
        $region44: #{tpu_custom_call.1} parent=39 // pred_fallthru
          _
      $region40: #{tpu_custom_call.1} parent=5 // pred_fallthru
        _
      %p240 = scmp.le.s32.totalorder 1, %s16
      %p241 = scmp.lt.s32.totalorder %s16, 3
      %p242 = pnand %p240, %p241
      %p243 = pneg %p242
      // Predicated region
      $region45: #{tpu_custom_call.1} parent=5 // pred_check
        _
      $region46: #{tpu_custom_call.1} parent=5 // pred_check_branch
        %245 = sbr.rel (%p242) target = $region48
      $region47: #{tpu_custom_call.1} parent=5 // pred_region
        %s246 = ssub.s32 %s16, 1
        %s247 = smul.u32 16, %s21
        %p248 = scmp.lt.s32.totalorder %s247, 31
        %s249 = scalar_select %p248, %s247, 31
        %s250 = smul.addr %s249, 8
        %s251 = scalar_lea.vmem %s0, %s250
        %p252 = pneg %p42
        %p253 = pneg %p39
        %p254 = pneg %p63
        %p255 = pneg %p60
        %p256 = pneg %p84
        %p257 = pneg %p81
        %p258 = pneg %p105
        %p259 = pneg %p102
        %p260 = pneg %p126
        %p261 = pneg %p123
        %p262 = pneg %p147
        %p263 = pneg %p144
        %p264 = pneg %p168
        %p265 = pneg %p165
        %p266 = pneg %p194
        %p267 = pneg %p191
        %s268 = sand.u32 %s181, 1
        %s269 = scalar_lea.sflag [#allocation3], %s268
        %s270 = sand.u32 %s181, 1
        %s271 = smul.addr %s270, 128
        %s272 = scalar_lea.vmem [#allocation2], %s271
        %s273 = smul.u32 16, %s21
        %p274 = scmp.lt.s32.totalorder %s273, 31
        %s275 = scalar_select %p274, %s273, 31
        %s276 = smul.addr %s275, 8
        %s277 = scalar_lea.vmem %s0, %s276
        %s278 = smul.u32 16, %s21
        %s279 = smul.u32 16, %s21
        %v280 = vld [vmem:[%s277] sm:$0xff]
        %v281 = vld [vmem:[%s277 + $0x8] sm:$0xff]
        %v282 = vld [vmem:[%s277 + $0x10] sm:$0xff]
        %v283 = vld [vmem:[%s277 + $0x18] sm:$0xff]
        %v284 = vld [vmem:[%s277 + $0x20] sm:$0xff]
        %v285 = vld [vmem:[%s277 + $0x28] sm:$0xff]
        %v286 = vld [vmem:[%s277 + $0x30] sm:$0xff]
        %v287 = vld [vmem:[%s277 + $0x38] sm:$0xff]
        %v288 = vld [vmem:[%s277 + $0x40] sm:$0xff]
        %v289 = vld [vmem:[%s277 + $0x48] sm:$0xff]
        %v290 = vld [vmem:[%s277 + $0x50] sm:$0xff]
        %v291 = vld [vmem:[%s277 + $0x58] sm:$0xff]
        %v292 = vld [vmem:[%s277 + $0x60] sm:$0xff]
        %v293 = vld [vmem:[%s277 + $0x68] sm:$0xff]
        %v294 = vld [vmem:[%s277 + $0x70] sm:$0xff]
        %v295 = vld [vmem:[%s277 + $0x78] sm:$0xff]
        %v296 = vld [vmem:[%s1] sm:$0xff]
        %v297 = vld [vmem:[%s1 + $0x8] sm:$0xff]
        %v298 = vld [vmem:[%s1 + $0x10] sm:$0xff]
        %v299 = vld [vmem:[%s1 + $0x18] sm:$0xff]
        %v300 = vld [vmem:[%s2] sm:$0x1]
        %v302 = vlaneseq
        %v303 = vshrl.u32 %v302, 7
        %v304 = vsub.s32 0, %v303
        %v305 = vrot.slane %v300, %v304
        %vm307 = vcmask 261120
        %v309 = vsel %vm307, %v280, 0
        %v312 = vsel %vm307, %v281, 0
        %v315 = vsel %vm307, %v282, 0
        %v318 = vsel %vm307, %v283, 0
        %v321 = vsel %vm307, %v284, 0
        %v324 = vsel %vm307, %v285, 0
        %v327 = vsel %vm307, %v286, 0
        %v330 = vsel %vm307, %v287, 0
        %v333 = vsel %vm307, %v288, 0
        %v336 = vsel %vm307, %v289, 0
        %v339 = vsel %vm307, %v290, 0
        %v342 = vsel %vm307, %v291, 0
        %v345 = vsel %vm307, %v292, 0
        %v348 = vsel %vm307, %v293, 0
        %v351 = vsel %vm307, %v294, 0
        %v354 = vsel %vm307, %v295, 0
        %356 = vmatprep.subr.mxu0 0.0
        %357 = vmatpush1.msra.mxu0 0.0
        %358 = vmatprep.subr.mxu0 0.0
        %359 = vmatpush1.msra.mxu0 0.0
        %360 = vmatprep.subr.mxu0 0.0
        %361 = vmatpush1.msra.mxu0 0.0
        %362 = vmatprep.subr.mxu0 0.0
        %363 = vmatpush1.msra.mxu0 0.0
        %364 = vmatprep.subr.mxu0 0.0
        %365 = vmatpush1.msra.mxu0 0.0
        %366 = vmatprep.subr.mxu0 0.0
        %367 = vmatpush1.msra.mxu0 0.0
        %368 = vmatprep.subr.mxu0 0.0
        %369 = vmatpush1.msra.mxu0 0.0
        %370 = vmatprep.subr.mxu0 0.0
        %371 = vmatpush1.msra.mxu0 0.0
        %372 = vmatprep.subr.mxu0 0.0
        %373 = vmatpush1.msra.mxu0 0.0
        %374 = vmatprep.subr.mxu0 0.0
        %375 = vmatpush1.msra.mxu0 0.0
        %376 = vmatprep.subr.mxu0 0.0
        %377 = vmatpush1.msra.mxu0 0.0
        %378 = vmatprep.subr.mxu0 0.0
        %379 = vmatpush1.msra.mxu0 0.0
        %380 = vmatprep.subr.mxu0 0.0
        %381 = vmatpush1.msra.mxu0 %v299
        %382 = vmatprep.subr.mxu0 0.0
        %383 = vmatpush1.msra.mxu0 %v298
        %384 = vmatprep.subr.mxu0 0.0
        %385 = vmatpush1.msra.mxu0 %v297
        %386 = vmatprep.subr.mxu0 0.0
        %387 = vmatpush1.msra.mxu0 %v296
        %388 = vmatprep.subr.mxu0 0.0
        %389 = vmatpush2.msra.mxu0 0.0
        %390 = vmatprep.subr.mxu0 0.0
        %391 = vmatpush2.msra.mxu0 0.0
        %392 = vmatprep.subr.mxu0 0.0
        %393 = vmatpush2.msra.mxu0 0.0
        %394 = vmatprep.subr.mxu0 0.0
        %395 = vmatpush2.msra.mxu0 0.0
        %396 = vmatprep.subr.mxu0 0.0
        %397 = vmatpush2.msra.mxu0 0.0
        %398 = vmatprep.subr.mxu0 0.0
        %399 = vmatpush2.msra.mxu0 0.0
        %400 = vmatprep.subr.mxu0 0.0
        %401 = vmatpush2.msra.mxu0 0.0
        %402 = vmatprep.subr.mxu0 0.0
        %403 = vmatpush2.msra.mxu0 0.0
        %404 = vmatprep.subr.mxu0 0.0
        %405 = vmatpush2.msra.mxu0 0.0
        %406 = vmatprep.subr.mxu0 0.0
        %407 = vmatpush2.msra.mxu0 0.0
        %408 = vmatprep.subr.mxu0 0.0
        %409 = vmatpush2.msra.mxu0 0.0
        %410 = vmatprep.subr.mxu0 0.0
        %411 = vmatpush2.msra.mxu0 0.0
        %412 = vmatprep.subr.mxu0 0.0
        %413 = vmatpush2.msra.mxu0 0.0
        %414 = vmatprep.subr.mxu0 0.0
        %415 = vmatpush2.msra.mxu0 0.0
        %416 = vmatprep.subr.mxu0 0.0
        %417 = vmatpush2.msra.mxu0 0.0
        %418 = vmatprep.subr.mxu0 0.0
        %419 = vmatpush2.msra.mxu0 0.0
        %420 = vmatprep.mubr.f32.mxu0 0.0
        %421 = vmatmul.mubr.f32.gmra.mxu0 %v309
        %v422 = vpop.f32.mrf.mxu0
        %v423 = vadd.f32 %v305, %v422
        %v424 = vpop.f32.mrf.mxu0
        %425 = vmatprep.mubr.f32.mxu0 0.0
        %426 = vmatmul.mubr.f32.gmra.mxu0 %v312
        %v427 = vpop.f32.mrf.mxu0
        %v428 = vadd.f32 %v305, %v427
        %v429 = vpop.f32.mrf.mxu0
        %430 = vmatprep.mubr.f32.mxu0 0.0
        %431 = vmatmul.mubr.f32.gmra.mxu0 %v315
        %v432 = vpop.f32.mrf.mxu0
        %v433 = vadd.f32 %v305, %v432
        %v434 = vpop.f32.mrf.mxu0
        %435 = vmatprep.mubr.f32.mxu0 0.0
        %436 = vmatmul.mubr.f32.gmra.mxu0 %v318
        %v437 = vpop.f32.mrf.mxu0
        %v438 = vadd.f32 %v305, %v437
        %v439 = vpop.f32.mrf.mxu0
        %440 = vmatprep.mubr.f32.mxu0 0.0
        %441 = vmatmul.mubr.f32.gmra.mxu0 %v321
        %v442 = vpop.f32.mrf.mxu0
        %v443 = vadd.f32 %v305, %v442
        %v444 = vpop.f32.mrf.mxu0
        %445 = vmatprep.mubr.f32.mxu0 0.0
        %446 = vmatmul.mubr.f32.gmra.mxu0 %v324
        %v447 = vpop.f32.mrf.mxu0
        %v448 = vadd.f32 %v305, %v447
        %v449 = vpop.f32.mrf.mxu0
        %450 = vmatprep.mubr.f32.mxu0 0.0
        %451 = vmatmul.mubr.f32.gmra.mxu0 %v327
        %v452 = vpop.f32.mrf.mxu0
        %v453 = vadd.f32 %v305, %v452
        %v454 = vpop.f32.mrf.mxu0
        %455 = vmatprep.mubr.f32.mxu0 0.0
        %456 = vmatmul.mubr.f32.gmra.mxu0 %v330
        %v457 = vpop.f32.mrf.mxu0
        %v458 = vadd.f32 %v305, %v457
        %v459 = vpop.f32.mrf.mxu0
        %460 = vmatprep.mubr.f32.mxu0 0.0
        %461 = vmatmul.mubr.f32.gmra.mxu0 %v333
        %v462 = vpop.f32.mrf.mxu0
        %v463 = vadd.f32 %v305, %v462
        %v464 = vpop.f32.mrf.mxu0
        %465 = vmatprep.mubr.f32.mxu0 0.0
        %466 = vmatmul.mubr.f32.gmra.mxu0 %v336
        %v467 = vpop.f32.mrf.mxu0
        %v468 = vadd.f32 %v305, %v467
        %v469 = vpop.f32.mrf.mxu0
        %470 = vmatprep.mubr.f32.mxu0 0.0
        %471 = vmatmul.mubr.f32.gmra.mxu0 %v339
        %v472 = vpop.f32.mrf.mxu0
        %v473 = vadd.f32 %v305, %v472
        %v474 = vpop.f32.mrf.mxu0
        %475 = vmatprep.mubr.f32.mxu0 0.0
        %476 = vmatmul.mubr.f32.gmra.mxu0 %v342
        %v477 = vpop.f32.mrf.mxu0
        %v478 = vadd.f32 %v305, %v477
        %v479 = vpop.f32.mrf.mxu0
        %480 = vmatprep.mubr.f32.mxu0 0.0
        %481 = vmatmul.mubr.f32.gmra.mxu0 %v345
        %v482 = vpop.f32.mrf.mxu0
        %v483 = vadd.f32 %v305, %v482
        %v484 = vpop.f32.mrf.mxu0
        %485 = vmatprep.mubr.f32.mxu0 0.0
        %486 = vmatmul.mubr.f32.gmra.mxu0 %v348
        %v487 = vpop.f32.mrf.mxu0
        %v488 = vadd.f32 %v305, %v487
        %v489 = vpop.f32.mrf.mxu0
        %490 = vmatprep.mubr.f32.mxu0 0.0
        %491 = vmatmul.mubr.f32.gmra.mxu0 %v351
        %v492 = vpop.f32.mrf.mxu0
        %v493 = vadd.f32 %v305, %v492
        %v494 = vpop.f32.mrf.mxu0
        %495 = vmatprep.mubr.f32.mxu0 0.0
        %496 = vmatmul.mubr.f32.gmra.mxu0 %v354
        %v497 = vpop.f32.mrf.mxu0
        %v498 = vadd.f32 %v305, %v497
        %v499 = vpop.f32.mrf.mxu0
        %500 = vdwg.mxu0
        %v501 = vtanh.pop %v423
        %v502 = vtanh.pop %v428
        %v503 = vtanh.pop %v433
        %v504 = vtanh.pop %v438
        %v505 = vtanh.pop %v443
        %v506 = vtanh.pop %v448
        %v507 = vtanh.pop %v453
        %v508 = vtanh.pop %v458
        %v509 = vtanh.pop %v463
        %v510 = vtanh.pop %v468
        %v511 = vtanh.pop %v473
        %v512 = vtanh.pop %v478
        %v513 = vtanh.pop %v483
        %v514 = vtanh.pop %v488
        %v515 = vtanh.pop %v493
        %v516 = vtanh.pop %v498
        %v517 = vld [vmem:[%s3] sm:$0xff]
        %v518 = vld [vmem:[%s3 + $0x8] sm:$0xff]
        %v519 = vld [vmem:[%s3 + $0x10] sm:$0xff]
        %v520 = vld [vmem:[%s3 + $0x18] sm:$0xff]
        %v521 = vld [vmem:[%s3 + $0x20] sm:$0xff]
        %v522 = vld [vmem:[%s3 + $0x28] sm:$0xff]
        %v523 = vld [vmem:[%s3 + $0x30] sm:$0xff]
        %v524 = vld [vmem:[%s3 + $0x38] sm:$0xff]
        %v525 = vld [vmem:[%s4] sm:$0x1]
        %v527 = vlaneseq
        %v528 = vshrl.u32 %v527, 7
        %v529 = vsub.s32 0, %v528
        %v530 = vrot.slane %v525, %v529
        %vm532 = vcmask 523264
        %v534 = vsel %vm532, %v501, 0
        %v537 = vsel %vm532, %v502, 0
        %v540 = vsel %vm532, %v503, 0
        %v543 = vsel %vm532, %v504, 0
        %v546 = vsel %vm532, %v505, 0
        %v549 = vsel %vm532, %v506, 0
        %v552 = vsel %vm532, %v507, 0
        %v555 = vsel %vm532, %v508, 0
        %v558 = vsel %vm532, %v509, 0
        %v561 = vsel %vm532, %v510, 0
        %v564 = vsel %vm532, %v511, 0
        %v567 = vsel %vm532, %v512, 0
        %v570 = vsel %vm532, %v513, 0
        %v573 = vsel %vm532, %v514, 0
        %v576 = vsel %vm532, %v515, 0
        %v579 = vsel %vm532, %v516, 0
        %581 = vmatprep.subr.mxu0 0.0
        %582 = vmatpush1.msra.mxu0 0.0
        %583 = vmatprep.subr.mxu0 0.0
        %584 = vmatpush1.msra.mxu0 0.0
        %585 = vmatprep.subr.mxu0 0.0
        %586 = vmatpush1.msra.mxu0 0.0
        %587 = vmatprep.subr.mxu0 0.0
        %588 = vmatpush1.msra.mxu0 0.0
        %589 = vmatprep.subr.mxu0 0.0
        %590 = vmatpush1.msra.mxu0 0.0
        %591 = vmatprep.subr.mxu0 0.0
        %592 = vmatpush1.msra.mxu0 0.0
        %593 = vmatprep.subr.mxu0 0.0
        %594 = vmatpush1.msra.mxu0 0.0
        %595 = vmatprep.subr.mxu0 0.0
        %596 = vmatpush1.msra.mxu0 0.0
        %597 = vmatprep.subr.mxu0 0.0
        %598 = vmatpush1.msra.mxu0 %v524
        %599 = vmatprep.subr.mxu0 0.0
        %600 = vmatpush1.msra.mxu0 %v523
        %601 = vmatprep.subr.mxu0 0.0
        %602 = vmatpush1.msra.mxu0 %v522
        %603 = vmatprep.subr.mxu0 0.0
        %604 = vmatpush1.msra.mxu0 %v521
        %605 = vmatprep.subr.mxu0 0.0
        %606 = vmatpush1.msra.mxu0 %v520
        %607 = vmatprep.subr.mxu0 0.0
        %608 = vmatpush1.msra.mxu0 %v519
        %609 = vmatprep.subr.mxu0 0.0
        %610 = vmatpush1.msra.mxu0 %v518
        %611 = vmatprep.subr.mxu0 0.0
        %612 = vmatpush1.msra.mxu0 %v517
        %613 = vmatprep.subr.mxu0 0.0
        %614 = vmatpush2.msra.mxu0 0.0
        %615 = vmatprep.subr.mxu0 0.0
        %616 = vmatpush2.msra.mxu0 0.0
        %617 = vmatprep.subr.mxu0 0.0
        %618 = vmatpush2.msra.mxu0 0.0
        %619 = vmatprep.subr.mxu0 0.0
        %620 = vmatpush2.msra.mxu0 0.0
        %621 = vmatprep.subr.mxu0 0.0
        %622 = vmatpush2.msra.mxu0 0.0
        %623 = vmatprep.subr.mxu0 0.0
        %624 = vmatpush2.msra.mxu0 0.0
        %625 = vmatprep.subr.mxu0 0.0
        %626 = vmatpush2.msra.mxu0 0.0
        %627 = vmatprep.subr.mxu0 0.0
        %628 = vmatpush2.msra.mxu0 0.0
        %629 = vmatprep.subr.mxu0 0.0
        %630 = vmatpush2.msra.mxu0 0.0
        %631 = vmatprep.subr.mxu0 0.0
        %632 = vmatpush2.msra.mxu0 0.0
        %633 = vmatprep.subr.mxu0 0.0
        %634 = vmatpush2.msra.mxu0 0.0
        %635 = vmatprep.subr.mxu0 0.0
        %636 = vmatpush2.msra.mxu0 0.0
        %637 = vmatprep.subr.mxu0 0.0
        %638 = vmatpush2.msra.mxu0 0.0
        %639 = vmatprep.subr.mxu0 0.0
        %640 = vmatpush2.msra.mxu0 0.0
        %641 = vmatprep.subr.mxu0 0.0
        %642 = vmatpush2.msra.mxu0 0.0
        %643 = vmatprep.subr.mxu0 0.0
        %644 = vmatpush2.msra.mxu0 0.0
        %645 = vmatprep.mubr.f32.mxu0 0.0
        %646 = vmatmul.mubr.f32.gmra.mxu0 %v534
        %v647 = vpop.f32.mrf.mxu0
        %v648 = vadd.f32 %v530, %v647
        %v649 = vpop.f32.mrf.mxu0
        %650 = vmatprep.mubr.f32.mxu0 0.0
        %651 = vmatmul.mubr.f32.gmra.mxu0 %v537
        %v652 = vpop.f32.mrf.mxu0
        %v653 = vadd.f32 %v530, %v652
        %v654 = vpop.f32.mrf.mxu0
        %655 = vmatprep.mubr.f32.mxu0 0.0
        %656 = vmatmul.mubr.f32.gmra.mxu0 %v540
        %v657 = vpop.f32.mrf.mxu0
        %v658 = vadd.f32 %v530, %v657
        %v659 = vpop.f32.mrf.mxu0
        %660 = vmatprep.mubr.f32.mxu0 0.0
        %661 = vmatmul.mubr.f32.gmra.mxu0 %v543
        %v662 = vpop.f32.mrf.mxu0
        %v663 = vadd.f32 %v530, %v662
        %v664 = vpop.f32.mrf.mxu0
        %665 = vmatprep.mubr.f32.mxu0 0.0
        %666 = vmatmul.mubr.f32.gmra.mxu0 %v546
        %v667 = vpop.f32.mrf.mxu0
        %v668 = vadd.f32 %v530, %v667
        %v669 = vpop.f32.mrf.mxu0
        %670 = vmatprep.mubr.f32.mxu0 0.0
        %671 = vmatmul.mubr.f32.gmra.mxu0 %v549
        %v672 = vpop.f32.mrf.mxu0
        %v673 = vadd.f32 %v530, %v672
        %v674 = vpop.f32.mrf.mxu0
        %675 = vmatprep.mubr.f32.mxu0 0.0
        %676 = vmatmul.mubr.f32.gmra.mxu0 %v552
        %v677 = vpop.f32.mrf.mxu0
        %v678 = vadd.f32 %v530, %v677
        %v679 = vpop.f32.mrf.mxu0
        %680 = vmatprep.mubr.f32.mxu0 0.0
        %681 = vmatmul.mubr.f32.gmra.mxu0 %v555
        %v682 = vpop.f32.mrf.mxu0
        %v683 = vadd.f32 %v530, %v682
        %v684 = vpop.f32.mrf.mxu0
        %685 = vmatprep.mubr.f32.mxu0 0.0
        %686 = vmatmul.mubr.f32.gmra.mxu0 %v558
        %v687 = vpop.f32.mrf.mxu0
        %v688 = vadd.f32 %v530, %v687
        %v689 = vpop.f32.mrf.mxu0
        %690 = vmatprep.mubr.f32.mxu0 0.0
        %691 = vmatmul.mubr.f32.gmra.mxu0 %v561
        %v692 = vpop.f32.mrf.mxu0
        %v693 = vadd.f32 %v530, %v692
        %v694 = vpop.f32.mrf.mxu0
        %695 = vmatprep.mubr.f32.mxu0 0.0
        %696 = vmatmul.mubr.f32.gmra.mxu0 %v564
        %v697 = vpop.f32.mrf.mxu0
        %v698 = vadd.f32 %v530, %v697
        %v699 = vpop.f32.mrf.mxu0
        %700 = vmatprep.mubr.f32.mxu0 0.0
        %701 = vmatmul.mubr.f32.gmra.mxu0 %v567
        %v702 = vpop.f32.mrf.mxu0
        %v703 = vadd.f32 %v530, %v702
        %v704 = vpop.f32.mrf.mxu0
        %705 = vmatprep.mubr.f32.mxu0 0.0
        %706 = vmatmul.mubr.f32.gmra.mxu0 %v570
        %v707 = vpop.f32.mrf.mxu0
        %v708 = vadd.f32 %v530, %v707
        %v709 = vpop.f32.mrf.mxu0
        %710 = vmatprep.mubr.f32.mxu0 0.0
        %711 = vmatmul.mubr.f32.gmra.mxu0 %v573
        %v712 = vpop.f32.mrf.mxu0
        %v713 = vadd.f32 %v530, %v712
        %v714 = vpop.f32.mrf.mxu0
        %715 = vmatprep.mubr.f32.mxu0 0.0
        %716 = vmatmul.mubr.f32.gmra.mxu0 %v576
        %v717 = vpop.f32.mrf.mxu0
        %v718 = vadd.f32 %v530, %v717
        %v719 = vpop.f32.mrf.mxu0
        %720 = vmatprep.mubr.f32.mxu0 0.0
        %721 = vmatmul.mubr.f32.gmra.mxu0 %v579
        %v722 = vpop.f32.mrf.mxu0
        %v723 = vadd.f32 %v530, %v722
        %v724 = vpop.f32.mrf.mxu0
        %725 = vdwg.mxu0
        %v726 = vtanh.pop %v648
        %v727 = vtanh.pop %v653
        %v728 = vtanh.pop %v658
        %v729 = vtanh.pop %v663
        %v730 = vtanh.pop %v668
        %v731 = vtanh.pop %v673
        %v732 = vtanh.pop %v678
        %v733 = vtanh.pop %v683
        %v734 = vtanh.pop %v688
        %v735 = vtanh.pop %v693
        %v736 = vtanh.pop %v698
        %v737 = vtanh.pop %v703
        %v738 = vtanh.pop %v708
        %v739 = vtanh.pop %v713
        %v740 = vtanh.pop %v718
        %v741 = vtanh.pop %v723
        %v742 = vld [vmem:[%s5] sm:$0xff]
        %v743 = vld [vmem:[%s5 + $0x8] sm:$0xff]
        %v744 = vld [vmem:[%s5 + $0x10] sm:$0xff]
        %v745 = vld [vmem:[%s5 + $0x18] sm:$0xff]
        %v746 = vld [vmem:[%s5 + $0x20] sm:$0xff]
        %v747 = vld [vmem:[%s5 + $0x28] sm:$0xff]
        %v748 = vld [vmem:[%s5 + $0x30] sm:$0xff]
        %v749 = vld [vmem:[%s5 + $0x38] sm:$0xff]
        %v750 = vld [vmem:[%s6] sm:$0x1]
        %v752 = vlaneseq
        %v753 = vshrl.u32 %v752, 7
        %v754 = vsub.s32 0, %v753
        %v755 = vrot.slane %v750, %v754
        %v758 = vsel %vm532, %v726, 0
        %v761 = vsel %vm532, %v727, 0
        %v764 = vsel %vm532, %v728, 0
        %v767 = vsel %vm532, %v729, 0
        %v770 = vsel %vm532, %v730, 0
        %v773 = vsel %vm532, %v731, 0
        %v776 = vsel %vm532, %v732, 0
        %v779 = vsel %vm532, %v733, 0
        %v782 = vsel %vm532, %v734, 0
        %v785 = vsel %vm532, %v735, 0
        %v788 = vsel %vm532, %v736, 0
        %v791 = vsel %vm532, %v737, 0
        %v794 = vsel %vm532, %v738, 0
        %v797 = vsel %vm532, %v739, 0
        %v800 = vsel %vm532, %v740, 0
        %v803 = vsel %vm532, %v741, 0
        %805 = vmatprep.subr.mxu0 0.0
        %806 = vmatpush1.msra.mxu0 0.0
        %807 = vmatprep.subr.mxu0 0.0
        %808 = vmatpush1.msra.mxu0 0.0
        %809 = vmatprep.subr.mxu0 0.0
        %810 = vmatpush1.msra.mxu0 0.0
        %811 = vmatprep.subr.mxu0 0.0
        %812 = vmatpush1.msra.mxu0 0.0
        %813 = vmatprep.subr.mxu0 0.0
        %814 = vmatpush1.msra.mxu0 0.0
        %815 = vmatprep.subr.mxu0 0.0
        %816 = vmatpush1.msra.mxu0 0.0
        %817 = vmatprep.subr.mxu0 0.0
        %818 = vmatpush1.msra.mxu0 0.0
        %819 = vmatprep.subr.mxu0 0.0
        %820 = vmatpush1.msra.mxu0 0.0
        %821 = vmatprep.subr.mxu0 0.0
        %822 = vmatpush1.msra.mxu0 %v749
        %823 = vmatprep.subr.mxu0 0.0
        %824 = vmatpush1.msra.mxu0 %v748
        %825 = vmatprep.subr.mxu0 0.0
        %826 = vmatpush1.msra.mxu0 %v747
        %827 = vmatprep.subr.mxu0 0.0
        %828 = vmatpush1.msra.mxu0 %v746
        %829 = vmatprep.subr.mxu0 0.0
        %830 = vmatpush1.msra.mxu0 %v745
        %831 = vmatprep.subr.mxu0 0.0
        %832 = vmatpush1.msra.mxu0 %v744
        %833 = vmatprep.subr.mxu0 0.0
        %834 = vmatpush1.msra.mxu0 %v743
        %835 = vmatprep.subr.mxu0 0.0
        %836 = vmatpush1.msra.mxu0 %v742
        %837 = vmatprep.subr.mxu0 0.0
        %838 = vmatpush2.msra.mxu0 0.0
        %839 = vmatprep.subr.mxu0 0.0
        %840 = vmatpush2.msra.mxu0 0.0
        %841 = vmatprep.subr.mxu0 0.0
        %842 = vmatpush2.msra.mxu0 0.0
        %843 = vmatprep.subr.mxu0 0.0
        %844 = vmatpush2.msra.mxu0 0.0
        %845 = vmatprep.subr.mxu0 0.0
        %846 = vmatpush2.msra.mxu0 0.0
        %847 = vmatprep.subr.mxu0 0.0
        %848 = vmatpush2.msra.mxu0 0.0
        %849 = vmatprep.subr.mxu0 0.0
        %850 = vmatpush2.msra.mxu0 0.0
        %851 = vmatprep.subr.mxu0 0.0
        %852 = vmatpush2.msra.mxu0 0.0
        %853 = vmatprep.subr.mxu0 0.0
        %854 = vmatpush2.msra.mxu0 0.0
        %855 = vmatprep.subr.mxu0 0.0
        %856 = vmatpush2.msra.mxu0 0.0
        %857 = vmatprep.subr.mxu0 0.0
        %858 = vmatpush2.msra.mxu0 0.0
        %859 = vmatprep.subr.mxu0 0.0
        %860 = vmatpush2.msra.mxu0 0.0
        %861 = vmatprep.subr.mxu0 0.0
        %862 = vmatpush2.msra.mxu0 0.0
        %863 = vmatprep.subr.mxu0 0.0
        %864 = vmatpush2.msra.mxu0 0.0
        %865 = vmatprep.subr.mxu0 0.0
        %866 = vmatpush2.msra.mxu0 0.0
        %867 = vmatprep.subr.mxu0 0.0
        %868 = vmatpush2.msra.mxu0 0.0
        %869 = vmatprep.mubr.f32.mxu0 0.0
        %870 = vmatmul.mubr.f32.gmra.mxu0 %v758
        %v871 = vpop.f32.mrf.mxu0
        %v872 = vadd.f32 %v755, %v871
        %v873 = vpop.f32.mrf.mxu0
        %874 = vmatprep.mubr.f32.mxu0 0.0
        %875 = vmatmul.mubr.f32.gmra.mxu0 %v761
        %v876 = vpop.f32.mrf.mxu0
        %v877 = vadd.f32 %v755, %v876
        %v878 = vpop.f32.mrf.mxu0
        %879 = vmatprep.mubr.f32.mxu0 0.0
        %880 = vmatmul.mubr.f32.gmra.mxu0 %v764
        %v881 = vpop.f32.mrf.mxu0
        %v882 = vadd.f32 %v755, %v881
        %v883 = vpop.f32.mrf.mxu0
        %884 = vmatprep.mubr.f32.mxu0 0.0
        %885 = vmatmul.mubr.f32.gmra.mxu0 %v767
        %v886 = vpop.f32.mrf.mxu0
        %v887 = vadd.f32 %v755, %v886
        %v888 = vpop.f32.mrf.mxu0
        %889 = vmatprep.mubr.f32.mxu0 0.0
        %890 = vmatmul.mubr.f32.gmra.mxu0 %v770
        %v891 = vpop.f32.mrf.mxu0
        %v892 = vadd.f32 %v755, %v891
        %v893 = vpop.f32.mrf.mxu0
        %894 = vmatprep.mubr.f32.mxu0 0.0
        %895 = vmatmul.mubr.f32.gmra.mxu0 %v773
        %v896 = vpop.f32.mrf.mxu0
        %v897 = vadd.f32 %v755, %v896
        %v898 = vpop.f32.mrf.mxu0
        %899 = vmatprep.mubr.f32.mxu0 0.0
        %900 = vmatmul.mubr.f32.gmra.mxu0 %v776
        %v901 = vpop.f32.mrf.mxu0
        %v902 = vadd.f32 %v755, %v901
        %v903 = vpop.f32.mrf.mxu0
        %904 = vmatprep.mubr.f32.mxu0 0.0
        %905 = vmatmul.mubr.f32.gmra.mxu0 %v779
        %v906 = vpop.f32.mrf.mxu0
        %v907 = vadd.f32 %v755, %v906
        %v908 = vpop.f32.mrf.mxu0
        %909 = vmatprep.mubr.f32.mxu0 0.0
        %910 = vmatmul.mubr.f32.gmra.mxu0 %v782
        %v911 = vpop.f32.mrf.mxu0
        %v912 = vadd.f32 %v755, %v911
        %v913 = vpop.f32.mrf.mxu0
        %914 = vmatprep.mubr.f32.mxu0 0.0
        %915 = vmatmul.mubr.f32.gmra.mxu0 %v785
        %v916 = vpop.f32.mrf.mxu0
        %v917 = vadd.f32 %v755, %v916
        %v918 = vpop.f32.mrf.mxu0
        %919 = vmatprep.mubr.f32.mxu0 0.0
        %920 = vmatmul.mubr.f32.gmra.mxu0 %v788
        %v921 = vpop.f32.mrf.mxu0
        %v922 = vadd.f32 %v755, %v921
        %v923 = vpop.f32.mrf.mxu0
        %924 = vmatprep.mubr.f32.mxu0 0.0
        %925 = vmatmul.mubr.f32.gmra.mxu0 %v791
        %v926 = vpop.f32.mrf.mxu0
        %v927 = vadd.f32 %v755, %v926
        %v928 = vpop.f32.mrf.mxu0
        %929 = vmatprep.mubr.f32.mxu0 0.0
        %930 = vmatmul.mubr.f32.gmra.mxu0 %v794
        %v931 = vpop.f32.mrf.mxu0
        %v932 = vadd.f32 %v755, %v931
        %v933 = vpop.f32.mrf.mxu0
        %934 = vmatprep.mubr.f32.mxu0 0.0
        %935 = vmatmul.mubr.f32.gmra.mxu0 %v797
        %v936 = vpop.f32.mrf.mxu0
        %v937 = vadd.f32 %v755, %v936
        %v938 = vpop.f32.mrf.mxu0
        %939 = vmatprep.mubr.f32.mxu0 0.0
        %940 = vmatmul.mubr.f32.gmra.mxu0 %v800
        %v941 = vpop.f32.mrf.mxu0
        %v942 = vadd.f32 %v755, %v941
        %v943 = vpop.f32.mrf.mxu0
        %944 = vmatprep.mubr.f32.mxu0 0.0
        %945 = vmatmul.mubr.f32.gmra.mxu0 %v803
        %v946 = vpop.f32.mrf.mxu0
        %v947 = vadd.f32 %v755, %v946
        %v948 = vpop.f32.mrf.mxu0
        %949 = vdwg.mxu0
        %v950 = vlaneseq
        %v951 = vand.u32 %v950, 127
        %vm952 = vcmp.ge.s32.totalorder %v951, 8
        %vm953 = vcmp.lt.s32.totalorder %v951, 16
        %vm954 = vmand %vm952, %vm953
        %v955 = vmul.f32 %v872, 1.442695
        %v956 = vpow.pop %v955
        %v957 = vmul.f32 %v877, 1.442695
        %v958 = vpow.pop %v957
        %v959 = vmul.f32 %v882, 1.442695
        %v960 = vpow.pop %v959
        %v961 = vmul.f32 %v887, 1.442695
        %v962 = vpow.pop %v961
        %v963 = vmul.f32 %v892, 1.442695
        %v964 = vpow.pop %v963
        %v965 = vmul.f32 %v897, 1.442695
        %v966 = vpow.pop %v965
        %v967 = vmul.f32 %v902, 1.442695
        %v968 = vpow.pop %v967
        %v969 = vmul.f32 %v907, 1.442695
        %v970 = vpow.pop %v969
        %v971 = vmul.f32 %v912, 1.442695
        %v972 = vpow.pop %v971
        %v973 = vmul.f32 %v917, 1.442695
        %v974 = vpow.pop %v973
        %v975 = vmul.f32 %v922, 1.442695
        %v976 = vpow.pop %v975
        %v977 = vmul.f32 %v927, 1.442695
        %v978 = vpow.pop %v977
        %v979 = vmul.f32 %v932, 1.442695
        %v980 = vpow.pop %v979
        %v981 = vmul.f32 %v937, 1.442695
        %v982 = vpow.pop %v981
        %v983 = vmul.f32 %v942, 1.442695
        %v984 = vpow.pop %v983
        %v985 = vmul.f32 %v947, 1.442695
        %v986 = vpow.pop %v985
        %v987 = vmax.f32 %v956, 0.0001
        %v988 = vmax.f32 %v958, 0.0001
        %v989 = vmax.f32 %v960, 0.0001
        %v990 = vmax.f32 %v962, 0.0001
        %v991 = vmax.f32 %v964, 0.0001
        %v992 = vmax.f32 %v966, 0.0001
        %v993 = vmax.f32 %v968, 0.0001
        %v994 = vmax.f32 %v970, 0.0001
        %v995 = vmax.f32 %v972, 0.0001
        %v996 = vmax.f32 %v974, 0.0001
        %v997 = vmax.f32 %v976, 0.0001
        %v998 = vmax.f32 %v978, 0.0001
        %v999 = vmax.f32 %v980, 0.0001
        %v1000 = vmax.f32 %v982, 0.0001
        %v1001 = vmax.f32 %v984, 0.0001
        %v1002 = vmax.f32 %v986, 0.0001
        %v1003 = vmin.f32 %v987, 50.0
        %v1004 = vmin.f32 %v988, 50.0
        %v1005 = vmin.f32 %v989, 50.0
        %v1006 = vmin.f32 %v990, 50.0
        %v1007 = vmin.f32 %v991, 50.0
        %v1008 = vmin.f32 %v992, 50.0
        %v1009 = vmin.f32 %v993, 50.0
        %v1010 = vmin.f32 %v994, 50.0
        %v1011 = vmin.f32 %v995, 50.0
        %v1012 = vmin.f32 %v996, 50.0
        %v1013 = vmin.f32 %v997, 50.0
        %v1014 = vmin.f32 %v998, 50.0
        %v1015 = vmin.f32 %v999, 50.0
        %v1016 = vmin.f32 %v1000, 50.0
        %v1017 = vmin.f32 %v1001, 50.0
        %v1018 = vmin.f32 %v1002, 50.0
        %v1019 = vsel %vm954, %v1003, %v872
        %v1020 = vsel %vm954, %v1004, %v877
        %v1021 = vsel %vm954, %v1005, %v882
        %v1022 = vsel %vm954, %v1006, %v887
        %v1023 = vsel %vm954, %v1007, %v892
        %v1024 = vsel %vm954, %v1008, %v897
        %v1025 = vsel %vm954, %v1009, %v902
        %v1026 = vsel %vm954, %v1010, %v907
        %v1027 = vsel %vm954, %v1011, %v912
        %v1028 = vsel %vm954, %v1012, %v917
        %v1029 = vsel %vm954, %v1013, %v922
        %v1030 = vsel %vm954, %v1014, %v927
        %v1031 = vsel %vm954, %v1015, %v932
        %v1032 = vsel %vm954, %v1016, %v937
        %v1033 = vsel %vm954, %v1017, %v942
        %v1034 = vsel %vm954, %v1018, %v947
        %1035 = vst [vmem:[%s272] sm:$0xff] %v1019
        %1036 = vst [vmem:[%s272 + $0x8] sm:$0xff] %v1020
        %1037 = vst [vmem:[%s272 + $0x10] sm:$0xff] %v1021
        %1038 = vst [vmem:[%s272 + $0x18] sm:$0xff] %v1022
        %1039 = vst [vmem:[%s272 + $0x20] sm:$0xff] %v1023
        %1040 = vst [vmem:[%s272 + $0x28] sm:$0xff] %v1024
        %1041 = vst [vmem:[%s272 + $0x30] sm:$0xff] %v1025
        %1042 = vst [vmem:[%s272 + $0x38] sm:$0xff] %v1026
        %1043 = vst [vmem:[%s272 + $0x40] sm:$0xff] %v1027
        %1044 = vst [vmem:[%s272 + $0x48] sm:$0xff] %v1028
        %1045 = vst [vmem:[%s272 + $0x50] sm:$0xff] %v1029
        %1046 = vst [vmem:[%s272 + $0x58] sm:$0xff] %v1030
        %1047 = vst [vmem:[%s272 + $0x60] sm:$0xff] %v1031
        %1048 = vst [vmem:[%s272 + $0x68] sm:$0xff] %v1032
        %1049 = vst [vmem:[%s272 + $0x70] sm:$0xff] %v1033
        %1050 = vst [vmem:[%s272 + $0x78] sm:$0xff] %v1034
        %s1051 = sand.u32 %s181, 1
        %s1052 = scalar_lea.sflag [#allocation3], %s1051
        %s1053 = sand.u32 %s181, 1
        %s1054 = smul.addr %s1053, 128
        %s1055 = scalar_lea.vmem [#allocation2], %s1054
        // Predicated region
        $region49: #{tpu_custom_call.1} parent=47 // pred_check
          %p1056 = pneg %p191
        $region50: #{tpu_custom_call.1} parent=47 // pred_check_branch
          %1058 = sbr.rel (%p1056) target = $region52
        $region51: #{tpu_custom_call.1} parent=47 // pred_region
          %s1059 = smul.u32 16, %s21
          %s1061 = ssub.s32 2048, 2048
          %1062 = vsyncadd %s1052, %s1061
          %s1063 = smul.addr %s1059, 128
          %s1064 = scalar_lea.hbm %s7, %s1063
          %s1065 = sshll.u32 %s1055, 4
          %s1066 = int_to_ptr.vmem [resolvable:$true] %s1065
          %1071 = dma.vmem_to_hbm [thread:$0]  %s1066, 2048, %s1064, %s1052, 128, 128, 8
        $region52: #{tpu_custom_call.1} parent=47 // pred_fallthru
          _
      $region48: #{tpu_custom_call.1} parent=5 // pred_fallthru
        _
      %p1072 = scmp.le.s32.totalorder 2, %s16
      // Predicated region
      $region53: #{tpu_custom_call.1} parent=5 // pred_check
        %p1073 = pneg %p1072
      $region54: #{tpu_custom_call.1} parent=5 // pred_check_branch
        %1075 = sbr.rel (%p1073) target = $region56
      $region55: #{tpu_custom_call.1} parent=5 // pred_region
        %s1076 = ssub.s32 %s16, 2
        // Predicated region
        $region57: #{tpu_custom_call.1} parent=55 // pred_check
          %p1077 = pneg %p197
        $region58: #{tpu_custom_call.1} parent=55 // pred_check_branch
          %1079 = sbr.rel (%p1077) target = $region60
        $region59: #{tpu_custom_call.1} parent=55 // pred_region
          %s1080 = sand.u32 %s182, 1
          %s1081 = scalar_lea.sflag [#allocation3], %s1080
          %s1082 = sand.u32 %s182, 1
          %s1083 = smul.addr %s1082, 128
          %s1084 = scalar_lea.vmem [#allocation2], %s1083
          %1085 = dma.done %s1081, 2048
        $region60: #{tpu_custom_call.1} parent=55 // pred_fallthru
          _
      $region56: #{tpu_custom_call.1} parent=5 // pred_fallthru
        _
    $region6: #{tpu_custom_call.1} parent=1 // loop_footer
      %s20 = sadd.s32 1, %s16
    $region7: #{tpu_custom_call.1} parent=1 // loop_footer_branch
      %15 = sbr.rel target = $region3
    $region8: #{tpu_custom_call.1} parent=1 // loop_exit
      _
    %1086 = vsyncpa [#allocation3], 1
    %s1087 = scalar_lea.sflag [#allocation3], 1
    %1088 = vsyncpa %s1087, 1

</llo_original>
